<compile_context>
chip_gen: v7x
topology: tpu7x:2x2x1
jax: 0.10.0
libtpu: 0.0.40
codegen_flags: <defaults>
</compile_context>

<pallas_src>
import math

import jax
import jax.numpy as jnp
from jax.experimental import pallas as pl
from jax.experimental.pallas import tpu as pltpu


_ROWS_PER_STEP = 256  # M-tile per grid step (fills the MXU M dimension)


def _round_up(x: int, m: int) -> int:
    return ((x + m - 1) // m) * m


def _ff_controller_kernel(x_ref, w1t_ref, b1_ref, w2t_ref, b2_ref, out_ref):
    """Fused feed-forward controller rows.

    x_ref:   [M_BLK, V]      bf16
    w1t_ref: [V, H]          bf16   (transpose of layer_1.weight)
    b1_ref:  [1, H]          f32
    w2t_ref: [H, H_pad]      bf16   (transpose of layer_2.weight, lane-padded)
    b2_ref:  [1, H_pad]      f32    (lane-padded)
    out_ref: [M_BLK, H_pad]  f32
    """
    x = x_ref[...]

    # layer_1: bf16 MXU matmul, f32 accumulate; bias + ReLU in f32.
    h1 = jnp.dot(x, w1t_ref[...], preferred_element_type=jnp.float32)
    h1 = jnp.maximum(h1 + b1_ref[...], 0.0)

    # layer_2: cast activation to bf16 for the MXU, accumulate f32.
    out = jnp.dot(h1.astype(w2t_ref.dtype), w2t_ref[...],
                  preferred_element_type=jnp.float32)
    out_ref[...] = out + b2_ref[...]


def _ff_rows(x2d, params):
    """Run the fused kernel over [M, V] rows -> [M, H]."""
    M, V = x2d.shape
    w1_t, b1, w2_t, b2 = params["w1_t"], params["b1"], params["w2_t"], params["b2"]
    H = w1_t.shape[1]
    H_pad = w2_t.shape[1]

    # Rows per grid step; pad M to a multiple of the block so BlockSpecs tile cleanly.
    m_blk = min(_ROWS_PER_STEP, _round_up(M, 8))
    m_pad = _round_up(M, m_blk)
    x_rows = x2d.astype(jnp.bfloat16)
    if m_pad != M:
        x_rows = jnp.pad(x_rows, ((0, m_pad - M), (0, 0)))

    flops = 2 * m_pad * V * H + 2 * m_pad * H * H_pad + 3 * m_pad * H_pad
    bytes_accessed = (2 * (m_pad * V + V * H + H * H_pad)      # bf16 inputs
                      + 4 * (H + H_pad + m_pad * H_pad))       # f32 biases + output

    out_pad = pl.pallas_call(
        _ff_controller_kernel,
        out_shape=jax.ShapeDtypeStruct((m_pad, H_pad), jnp.float32),
        grid_spec=pltpu.PrefetchScalarGridSpec(
            num_scalar_prefetch=0,
            grid=(m_pad // m_blk,),
            in_specs=[
                pl.BlockSpec((m_blk, V), lambda i: (i, 0)),   # streamed rows
                pl.BlockSpec((V, H), lambda i: (0, 0)),       # resident W1^T
                pl.BlockSpec((1, H), lambda i: (0, 0)),       # resident b1
                pl.BlockSpec((H, H_pad), lambda i: (0, 0)),   # resident W2^T
                pl.BlockSpec((1, H_pad), lambda i: (0, 0)),   # resident b2
            ],
            out_specs=pl.BlockSpec((m_blk, H_pad), lambda i: (i, 0)),
        ),
        compiler_params=pltpu.CompilerParams(
            dimension_semantics=("parallel",)),
        cost_estimate=pl.CostEstimate(
            flops=flops, transcendentals=0, bytes_accessed=bytes_accessed),
    )(x_rows, w1_t, b1, w2_t, b2)

    return out_pad[:M, :H]


def feedforward_controller_forward(x, previous_state, params):
    """Pallas equivalent of FeedForwardController.forward (single step).

    Args:
      x: [B, V] input.
      previous_state: ignored (feed-forward controller is stateless).
      params: dict from init_params.

    Returns:
      (output [B, H], None)
    """
    del previous_state
    return _ff_rows(x, params), None


def feedforward_controller_forward_sequence(xs, params):
    """Apply the controller to a whole sequence in ONE pallas_call.

    Timesteps and batch are stacked into the matmul M dimension; weights stay
    resident in VMEM across all grid steps (the main perf win).

    Args:
      xs: [T, B, V]
    Returns:
      (outputs [T, B, H], None)
    """
    T, B, V = xs.shape
    out = _ff_rows(xs.reshape(T * B, V), params)
    return out.reshape(T, B, -1), None


def get_initial_state(batch_size):
    """Mirrors FeedForwardController.get_initial_state: stateless -> None."""
    del batch_size
    return None


def init_params(key, vector_length, hidden_size):
    """Parameter init mirroring Controller._initialize_parameters.

    Weights are stored pre-transposed in bf16; layer_2 weight/bias are zero-
    padded along the output dim to a multiple of 128 for lane-dense stores.
    """
    stdev = 5.0 / math.sqrt(vector_length + hidden_size)
    h_pad = _round_up(hidden_size, 128)
    k1, k2 = jax.random.split(key, 2)
    # layer_1.weight: [H, V] in PyTorch; store transposed [V, H].
    w1 = jax.random.uniform(k1, (hidden_size, vector_length), jnp.float32,
                            -stdev, stdev)
    # layer_2.weight: [H, H]; store transposed and lane-padded [H, H_pad].
    w2 = jax.random.uniform(k2, (hidden_size, hidden_size), jnp.float32,
                            -stdev, stdev)
    w2_t = jnp.pad(w2.T, ((0, 0), (0, h_pad - hidden_size)))
    return {
        "w1_t": w1.T.astype(jnp.bfloat16),                    # [V, H]
        "b1": jnp.zeros((1, hidden_size), jnp.float32),       # bias init -> 0
        "w2_t": w2_t.astype(jnp.bfloat16),                    # [H, H_pad]
        "b2": jnp.zeros((1, h_pad), jnp.float32),
    }


def _reference_forward(x2d, params):
    """Pure-JAX reference mirroring the kernel's mixed precision."""
    H = params["w1_t"].shape[1]
    xb = x2d.astype(jnp.bfloat16)
    h1 = jnp.dot(xb, params["w1_t"], preferred_element_type=jnp.float32)
    h1 = jnp.maximum(h1 + params["b1"], 0.0)
    out = jnp.dot(h1.astype(jnp.bfloat16), params["w2_t"],
                  preferred_element_type=jnp.float32) + params["b2"]
    return out[:, :H]


if __name__ == "__main__":
    VECTOR_LENGTH = 8
    HIDDEN_SIZE = 32
    BATCH = 2
    SEQ_LEN = 256

    key = jax.random.PRNGKey(0)
    pkey, xkey, skey = jax.random.split(key, 3)

    params = init_params(pkey, VECTOR_LENGTH, HIDDEN_SIZE)

    # --- single controller step (matches the PyTorch module's forward) ---
    x = jax.random.normal(xkey, (BATCH, VECTOR_LENGTH), jnp.float32)
    state = get_initial_state(BATCH)
    out, new_state = feedforward_controller_forward(x, state, params)
    jax.block_until_ready(out)

    ref_out = _reference_forward(x, params)
    assert out.shape == (BATCH, HIDDEN_SIZE)
    assert new_state is None
    assert jnp.allclose(out, ref_out, atol=1e-3, rtol=1e-3)

    # --- whole sequence in one pallas_call (weights resident, grid over rows) ---
    xs = jax.random.normal(skey, (SEQ_LEN, BATCH, VECTOR_LENGTH), jnp.float32)
    outs, seq_state = feedforward_controller_forward_sequence(xs, params)
    jax.block_until_ready(outs)

    ref_seq = _reference_forward(xs.reshape(-1, VECTOR_LENGTH), params)
    ref_seq = ref_seq.reshape(SEQ_LEN, BATCH, HIDDEN_SIZE)
    assert outs.shape == (SEQ_LEN, BATCH, HIDDEN_SIZE)
    assert seq_state is None
    assert jnp.allclose(outs, ref_seq, atol=1e-3, rtol=1e-3)

    print("KERNEL_OK")
</pallas_src>

<mosaic_0001>
module attributes {stable_mosaic.version = 11 : i64} {
  func.func @_ff_controller_kernel(%arg0: i32, %arg1: memref<8x8xbf16, #tpu.memory_space<vmem>>, %arg2: memref<8x32xbf16, #tpu.memory_space<vmem>>, %arg3: memref<1x32xf32, #tpu.memory_space<vmem>>, %arg4: memref<32x128xbf16, #tpu.memory_space<vmem>>, %arg5: memref<1x128xf32, #tpu.memory_space<vmem>>, %arg6: memref<8x128xf32, #tpu.memory_space<vmem>>) attributes {dimension_semantics = [#tpu.dimension_semantics<parallel>], iteration_bounds = array<i64: 1>, scalar_prefetch = 0 : i64, scratch_operands = 0 : i64, tpu.core_type = #tpu.core_type<tc>, window_params = [{transform_indices = @transform_0, window_bounds = array<i64: 8, 8>}, {pipeline_mode = #tpu.pipeline_mode<synchronous>, transform_indices = @transform_1, window_bounds = array<i64: 8, 32>}, {pipeline_mode = #tpu.pipeline_mode<synchronous>, transform_indices = @transform_2, window_bounds = array<i64: 1, 32>}, {pipeline_mode = #tpu.pipeline_mode<synchronous>, transform_indices = @transform_3, window_bounds = array<i64: 32, 128>}, {pipeline_mode = #tpu.pipeline_mode<synchronous>, transform_indices = @transform_4, window_bounds = array<i64: 1, 128>}, {transform_indices = @transform_5, window_bounds = array<i64: 8, 128>}]} {
    %c0 = arith.constant 0 : index
    %c0_0 = arith.constant 0 : index
    %0 = vector.load %arg1[%c0, %c0_0] : memref<8x8xbf16, #tpu.memory_space<vmem>>, vector<8x8xbf16>
    %c0_1 = arith.constant 0 : index
    %c0_2 = arith.constant 0 : index
    %1 = vector.load %arg2[%c0_1, %c0_2] : memref<8x32xbf16, #tpu.memory_space<vmem>>, vector<8x32xbf16>
    %cst = arith.constant dense<0.000000e+00> : vector<8x32xf32>
    %2 = tpu.matmul %0, %1, %cst {dimension_numbers = #tpu.dot_dimension_numbers<[1], [0], [0], [1], [0, 0, 1, 1], [], []>} : vector<8x8xbf16>, vector<8x32xbf16>, vector<8x32xf32> -> vector<8x32xf32>
    %c0_3 = arith.constant 0 : index
    %c0_4 = arith.constant 0 : index
    %3 = vector.load %arg3[%c0_3, %c0_4] : memref<1x32xf32, #tpu.memory_space<vmem>>, vector<1x32xf32>
    %4 = vector.broadcast %3 : vector<1x32xf32> to vector<8x32xf32>
    %5 = arith.addf %2, %4 : vector<8x32xf32>
    %cst_5 = arith.constant 0.000000e+00 : f32
    %6 = vector.broadcast %cst_5 : f32 to vector<8x32xf32>
    %7 = arith.maximumf %5, %6 : vector<8x32xf32>
    %8 = arith.truncf %7 : vector<8x32xf32> to vector<8x32xbf16>
    %c0_6 = arith.constant 0 : index
    %c0_7 = arith.constant 0 : index
    %9 = vector.load %arg4[%c0_6, %c0_7] : memref<32x128xbf16, #tpu.memory_space<vmem>>, vector<32x128xbf16>
    %cst_8 = arith.constant dense<0.000000e+00> : vector<8x128xf32>
    %10 = tpu.matmul %8, %9, %cst_8 {dimension_numbers = #tpu.dot_dimension_numbers<[1], [0], [0], [1], [0, 0, 1, 1], [], []>} : vector<8x32xbf16>, vector<32x128xbf16>, vector<8x128xf32> -> vector<8x128xf32>
    %c0_9 = arith.constant 0 : index
    %c0_10 = arith.constant 0 : index
    %11 = vector.load %arg5[%c0_9, %c0_10] : memref<1x128xf32, #tpu.memory_space<vmem>>, vector<1x128xf32>
    %12 = vector.broadcast %11 : vector<1x128xf32> to vector<8x128xf32>
    %13 = arith.addf %10, %12 : vector<8x128xf32>
    %c0_11 = arith.constant 0 : index
    %c0_12 = arith.constant 0 : index
    %14 = vector.load %arg6[%c0_11, %c0_12] : memref<8x128xf32, #tpu.memory_space<vmem>>, vector<8x128xf32>
    tpu.vector_store %arg6[%c0_11, %c0_12], %13 {strides = array<i32>} : memref<8x128xf32, #tpu.memory_space<vmem>>, vector<8x128xf32>,
    return
  }
  func.func @transform_0(%arg0: i32) -> (i32, i32) {
    %c0_i32 = arith.constant 0 : i32
    %c0_i32_0 = arith.constant 0 : i32
    return %arg0, %c0_i32 : i32, i32
  }
  func.func @transform_1(%arg0: i32) -> (i32, i32) {
    %c0_i32 = arith.constant 0 : i32
    %c0_i32_0 = arith.constant 0 : i32
    %c0_i32_1 = arith.constant 0 : i32
    return %c0_i32, %c0_i32_0 : i32, i32
  }
  func.func @transform_2(%arg0: i32) -> (i32, i32) {
    %c0_i32 = arith.constant 0 : i32
    %c0_i32_0 = arith.constant 0 : i32
    %c0_i32_1 = arith.constant 0 : i32
    return %c0_i32, %c0_i32_0 : i32, i32
  }
  func.func @transform_3(%arg0: i32) -> (i32, i32) {
    %c0_i32 = arith.constant 0 : i32
    %c0_i32_0 = arith.constant 0 : i32
    %c0_i32_1 = arith.constant 0 : i32
    return %c0_i32, %c0_i32_0 : i32, i32
  }
  func.func @transform_4(%arg0: i32) -> (i32, i32) {
    %c0_i32 = arith.constant 0 : i32
    %c0_i32_0 = arith.constant 0 : i32
    %c0_i32_1 = arith.constant 0 : i32
    return %c0_i32, %c0_i32_0 : i32, i32
  }
  func.func @transform_5(%arg0: i32) -> (i32, i32) {
    %c0_i32 = arith.constant 0 : i32
    %c0_i32_0 = arith.constant 0 : i32
    return %arg0, %c0_i32 : i32, i32
  }
}

</mosaic_0001>

<llo_original>
// kernel: tpu_custom_call.1
$region0: #{tpu_custom_call.1}
  #allocation0 [shape = 'u32[]', space=smem, size = 0x4, offset = 0x4, fixed_abs, tag = 'smem constant byte address 0x4 - core index']
  #allocation1 [shape = 'u32[144,128]{1,0:T(1,128)}', space=vmem, size = 0x12000, scoped, tag = 'internal scratch']
  %s0 = inlined_call_operand.hbm [shape: bf16[8,8], index: 0, kind: input, shape index: {}]
  %s1 = inlined_call_operand.hbm [shape: bf16[8,32], index: 1, kind: input, shape index: {}]
  %s2 = inlined_call_operand.vmem [shape: f32[1,32], index: 2, kind: input, shape index: {}]
  %s3 = inlined_call_operand.hbm [shape: bf16[32,128], index: 3, kind: input, shape index: {}]
  %s4 = inlined_call_operand.vmem [shape: f32[1,128], index: 4, kind: input, shape index: {}]
  %s5 = inlined_call_operand.hbm [shape: f32[8,128], index: 5, kind: output, shape index: {}]
  %s6 = sld [smem:[#allocation0]]
  $region42: #{tpu_custom_call.1} parent=0
    _
  %s8 = ssub.s32 1, %s6
  %s9 = scalar_select 0, %s8, %s6
  $region1: #{tpu_custom_call.1} parent=0
    #allocation2 [shape = 'u8[2048]{0}', space=vmem, size = 0x800, scoped, tag = 'input window, operand 0, single buffered']
    #allocation3 [shape = 's32[1]{0}', space=sflag, size = 0x4, scoped, tag = 'scoped memory for tpu_custom_call.1']
    #allocation4 [shape = 's32[1]{0}', space=sflag, size = 0x4, scoped, tag = 'scoped memory for tpu_custom_call.1']
    #allocation5 [shape = 'u8[2048]{0}', space=vmem, size = 0x800, scoped, tag = 'input window, operand 1, single buffered']
    #allocation6 [shape = 's32[1]{0}', space=sflag, size = 0x4, scoped, tag = 'scoped memory for tpu_custom_call.1']
    #allocation7 [shape = 'u8[8192]{0}', space=vmem, size = 0x2000, scoped, tag = 'input window, operand 3, single buffered']
    #allocation8 [shape = 'u8[4096]{0}', space=vmem, size = 0x1000, scoped, tag = 'output window, operand 0, single buffered']
    %10 = vsyncpa [#allocation3], 0
    %11 = vsyncpa [#allocation6], 0
    %12 = vsyncpa [#allocation4], 0
    // Predicated region
    $region2: #{tpu_custom_call.1} parent=1 // pred_check
      _
    $region3: #{tpu_custom_call.1} parent=1 // pred_check_branch
      %14 = sbr.rel (0) target = $region5
    $region4: #{tpu_custom_call.1} parent=1 // pred_region
      %s16 = ssub.s32 64, 64
      %17 = vsyncadd [#allocation3], %s16
      %s19 = sshll.u32 [#allocation2], 4
      %s20 = int_to_ptr.vmem [resolvable:$true] %s19
      %22 = dma.hbm_to_vmem [thread:$0]  %s0, 64, %s20, [#allocation3]
    $region5: #{tpu_custom_call.1} parent=1 // pred_fallthru
      _
    // Predicated region
    $region6: #{tpu_custom_call.1} parent=1 // pred_check
      _
    $region7: #{tpu_custom_call.1} parent=1 // pred_check_branch
      %24 = sbr.rel (0) target = $region9
    $region8: #{tpu_custom_call.1} parent=1 // pred_region
      %s26 = ssub.s32 64, 64
      %27 = vsyncadd [#allocation6], %s26
      %s29 = sshll.u32 [#allocation5], 4
      %s30 = int_to_ptr.vmem [resolvable:$true] %s29
      %32 = dma.hbm_to_vmem [thread:$0]  %s1, 64, %s30, [#allocation6]
    $region9: #{tpu_custom_call.1} parent=1 // pred_fallthru
      _
    // Predicated region
    $region10: #{tpu_custom_call.1} parent=1 // pred_check
      _
    $region11: #{tpu_custom_call.1} parent=1 // pred_check_branch
      %34 = sbr.rel (0) target = $region13
    $region12: #{tpu_custom_call.1} parent=1 // pred_region
      _
    $region13: #{tpu_custom_call.1} parent=1 // pred_fallthru
      _
    // Predicated region
    $region14: #{tpu_custom_call.1} parent=1 // pred_check
      _
    $region15: #{tpu_custom_call.1} parent=1 // pred_check_branch
      %36 = sbr.rel (0) target = $region17
    $region16: #{tpu_custom_call.1} parent=1 // pred_region
      %s38 = ssub.s32 256, 256
      %39 = vsyncadd [#allocation6], %s38
      %s40 = sshll.u32 [#allocation7], 4
      %s41 = int_to_ptr.vmem [resolvable:$true] %s40
      %46 = dma.hbm_to_vmem [thread:$0]  %s3, 256, %s41, [#allocation6], 64, 64, 4
    $region17: #{tpu_custom_call.1} parent=1 // pred_fallthru
      _
    // Predicated region
    $region18: #{tpu_custom_call.1} parent=1 // pred_check
      _
    $region19: #{tpu_custom_call.1} parent=1 // pred_check_branch
      %48 = sbr.rel (0) target = $region21
    $region20: #{tpu_custom_call.1} parent=1 // pred_region
      _
    $region21: #{tpu_custom_call.1} parent=1 // pred_fallthru
      _
    // Predicated region
    $region22: #{tpu_custom_call.1} parent=1 // pred_check
      _
    $region23: #{tpu_custom_call.1} parent=1 // pred_check_branch
      %50 = sbr.rel (0) target = $region25
    $region24: #{tpu_custom_call.1} parent=1 // pred_region
      %51 = dma.done [#allocation3], 64
    $region25: #{tpu_custom_call.1} parent=1 // pred_fallthru
      _
    // Predicated region
    $region26: #{tpu_custom_call.1} parent=1 // pred_check
      _
    $region27: #{tpu_custom_call.1} parent=1 // pred_check_branch
      %53 = sbr.rel (0) target = $region29
    $region28: #{tpu_custom_call.1} parent=1 // pred_region
      %54 = dma.done [#allocation6], 64
    $region29: #{tpu_custom_call.1} parent=1 // pred_fallthru
      _
    // Predicated region
    $region30: #{tpu_custom_call.1} parent=1 // pred_check
      _
    $region31: #{tpu_custom_call.1} parent=1 // pred_check_branch
      %56 = sbr.rel (0) target = $region33
    $region32: #{tpu_custom_call.1} parent=1 // pred_region
      %57 = dma.done [#allocation6], 256
    $region33: #{tpu_custom_call.1} parent=1 // pred_fallthru
      _
    %v59 = vld [vmem:[#allocation2] sm:$0xf]
    %v60 = vld [vmem:[#allocation5] sm:$0xf]
    %v61 = vld [vmem:[%s2] sm:$0x1]
    %v63 = vlaneseq
    %v64 = vshrl.u32 %v63, 7
    %v65 = vsub.s32 0, %v64
    %v66 = vrot.slane %v61, %v65
    %vm68 = vcmask 64512
    %v70 = vsel %vm68, %v59, 0
    %vm72 = vcmask 1043456
    %v74 = vsel %vm72, %v60, 0
    %76 = vmatprep.subr.bf16.mxu0 0
    %77 = vmatpush1.bf16.msra.mxu0 %v74
    %78 = vmatprep.subr.bf16.mxu0 0
    %79 = vmatpush1.bf16.msra.mxu0 0
    %80 = vmatprep.subr.bf16.mxu0 0
    %81 = vmatpush1.bf16.msra.mxu0 0
    %82 = vmatprep.subr.bf16.mxu0 0
    %83 = vmatpush1.bf16.msra.mxu0 0
    %84 = vmatprep.subr.bf16.mxu0 0
    %85 = vmatpush1.bf16.msra.mxu0 0
    %86 = vmatprep.subr.bf16.mxu0 0
    %87 = vmatpush1.bf16.msra.mxu0 0
    %88 = vmatprep.subr.bf16.mxu0 0
    %89 = vmatpush1.bf16.msra.mxu0 0
    %90 = vmatprep.subr.bf16.mxu0 0
    %91 = vmatpush1.bf16.msra.mxu0 0
    %92 = vmatprep.subr.bf16.mxu0 0
    %93 = vmatpush1.bf16.msra.mxu0 0
    %94 = vmatprep.subr.bf16.mxu0 0
    %95 = vmatpush1.bf16.msra.mxu0 0
    %96 = vmatprep.subr.bf16.mxu0 0
    %97 = vmatpush1.bf16.msra.mxu0 0
    %98 = vmatprep.subr.bf16.mxu0 0
    %99 = vmatpush1.bf16.msra.mxu0 0
    %100 = vmatprep.subr.bf16.mxu0 0
    %101 = vmatpush1.bf16.msra.mxu0 0
    %102 = vmatprep.subr.bf16.mxu0 0
    %103 = vmatpush1.bf16.msra.mxu0 0
    %104 = vmatprep.subr.bf16.mxu0 0
    %105 = vmatpush1.bf16.msra.mxu0 0
    %106 = vmatprep.subr.bf16.mxu0 0
    %107 = vmatpush1.bf16.msra.mxu0 0
    %108 = vmatprep.mubr.bf16.mxu0 0
    %109 = vmatmul.mubr.bf16.gmra.mrb[0].mxu0 %v70
    %v110 = vpop.f32.mrb[0].mxu0
    %v111 = vadd.f32 %v66, %v110
    %v112 = vpop.f32.mrb[0].mxu0
    %v113 = vpop.f32.mrb[0].mxu0
    %v114 = vpop.f32.mrb[0].mxu0
    %115 = vdwg.mxu0
    %v116 = vmax.f32 %v111, 0.0
    %v117 = vpack.c.bf16 %v116, %v116
    %v118 = vld [vmem:[#allocation7] sm:$0xf]
    %v119 = vld [vmem:[#allocation7 + $0x4] sm:$0xf]
    %v120 = vld [vmem:[#allocation7 + $0x8] sm:$0xf]
    %v121 = vld [vmem:[#allocation7 + $0xc] sm:$0xf]
    %v122 = vld [vmem:[%s4] sm:$0x1]
    %v124 = vlaneseq
    %v125 = vshrl.u32 %v124, 7
    %v126 = vsub.s32 0, %v125
    %v127 = vrot.slane %v122, %v126
    %v133 = vunpack.c.l.b16 %v118
    %v134 = vunpack.c.l.b16 %v119
    %v135 = vunpack.c.l.b16 %v120
    %v136 = vunpack.c.l.b16 %v121
    %v137 = vpack.c.b16 %v134, %v133
    %v138 = vpack.c.b16 %v136, %v135
    %vm141 = vcmask 261120
    %v143 = vsel %vm141, %v117, 0
    %145 = vmatprep.subr.bf16.mxu0 0
    %146 = vmatpush1.bf16.msra.mxu0 %v137
    %147 = vmatprep.subr.bf16.mxu0 0
    %148 = vmatpush1.bf16.msra.mxu0 %v138
    %149 = vmatprep.subr.bf16.mxu0 0
    %150 = vmatpush1.bf16.msra.mxu0 0
    %151 = vmatprep.subr.bf16.mxu0 0
    %152 = vmatpush1.bf16.msra.mxu0 0
    %153 = vmatprep.subr.bf16.mxu0 0
    %154 = vmatpush1.bf16.msra.mxu0 0
    %155 = vmatprep.subr.bf16.mxu0 0
    %156 = vmatpush1.bf16.msra.mxu0 0
    %157 = vmatprep.subr.bf16.mxu0 0
    %158 = vmatpush1.bf16.msra.mxu0 0
    %159 = vmatprep.subr.bf16.mxu0 0
    %160 = vmatpush1.bf16.msra.mxu0 0
    %161 = vmatprep.subr.bf16.mxu0 0
    %162 = vmatpush1.bf16.msra.mxu0 0
    %163 = vmatprep.subr.bf16.mxu0 0
    %164 = vmatpush1.bf16.msra.mxu0 0
    %165 = vmatprep.subr.bf16.mxu0 0
    %166 = vmatpush1.bf16.msra.mxu0 0
    %167 = vmatprep.subr.bf16.mxu0 0
    %168 = vmatpush1.bf16.msra.mxu0 0
    %169 = vmatprep.subr.bf16.mxu0 0
    %170 = vmatpush1.bf16.msra.mxu0 0
    %171 = vmatprep.subr.bf16.mxu0 0
    %172 = vmatpush1.bf16.msra.mxu0 0
    %173 = vmatprep.subr.bf16.mxu0 0
    %174 = vmatpush1.bf16.msra.mxu0 0
    %175 = vmatprep.subr.bf16.mxu0 0
    %176 = vmatpush1.bf16.msra.mxu0 0
    %177 = vmatprep.mubr.bf16.mxu0 0
    %178 = vmatmul.mubr.bf16.gmra.mrb[0].mxu0 %v143
    %v179 = vpop.f32.mrb[0].mxu0
    %v180 = vadd.f32 %v127, %v179
    %v181 = vpop.f32.mrb[0].mxu0
    %v182 = vpop.f32.mrb[0].mxu0
    %v183 = vpop.f32.mrb[0].mxu0
    %184 = vdwg.mxu0
    %185 = vst [vmem:[#allocation8] sm:$0xff] %v180
    // Predicated region
    $region34: #{tpu_custom_call.1} parent=1 // pred_check
      _
    $region35: #{tpu_custom_call.1} parent=1 // pred_check_branch
      %187 = sbr.rel (0) target = $region37
    $region36: #{tpu_custom_call.1} parent=1 // pred_region
      %s189 = ssub.s32 128, 128
      %190 = vsyncadd [#allocation4], %s189
      %s192 = sshll.u32 [#allocation8], 4
      %s193 = int_to_ptr.vmem [resolvable:$true] %s192
      %195 = dma.vmem_to_hbm [thread:$0]  %s193, 128, %s5, [#allocation4]
    $region37: #{tpu_custom_call.1} parent=1 // pred_fallthru
      _
    // Predicated region
    $region38: #{tpu_custom_call.1} parent=1 // pred_check
      _
    $region39: #{tpu_custom_call.1} parent=1 // pred_check_branch
      %197 = sbr.rel (0) target = $region41
    $region40: #{tpu_custom_call.1} parent=1 // pred_region
      %198 = dma.done [#allocation4], 128
    $region41: #{tpu_custom_call.1} parent=1 // pred_fallthru
      _
    %199 = vsyncpa [#allocation3], 1
    %200 = vsyncpa [#allocation6], 1
    %201 = vsyncpa [#allocation4], 1

</llo_original>
